<compile_context>
chip_gen: v6e
topology: v6e:2x2x1
jax: 0.10.0
libtpu: 0.0.40
codegen_flags: <defaults>
</compile_context>

<pallas_src>
from collections import OrderedDict

import jax
import jax.numpy as jnp
from jax.experimental import pallas as pl
from jax.experimental.pallas import tpu as pltpu


def _fused_fc_relu_kernel(x_ref, w_ref, o_ref):
    # x_ref: (B, D_tot+1)      last column is ones (bias input)
    # w_ref: (D_tot+1, N_pad)  block-diagonal per-key weights, last row = biases
    # o_ref: (B, N_pad)        lane-dense (N_pad % 128 == 0) single store
    y = jnp.dot(x_ref[...], w_ref[...], preferred_element_type=jnp.float32)
    o_ref[...] = jnp.maximum(y, 0.0).astype(o_ref.dtype)


def cumulative_stat_encoder_pallas(x_dict, params, output_dim):
    """x_dict: OrderedDict[name -> (B, in_dim)]; params: OrderedDict[name -> (W, b)].

    W has shape (in_dim, output_dim) (already transposed vs. torch Linear),
    b has shape (output_dim,).  Returns (B, K*output_dim) with keys taken in
    params (module) order, filtered by presence in x_dict — exactly like the
    PyTorch forward.
    """
    keys = [k for k in params.keys() if k in x_dict]
    assert keys, "no matching keys"
    B = x_dict[keys[0]].shape[0]
    dims = [x_dict[k].shape[1] for k in keys]
    K = len(keys)
    N = K * output_dim
    N_pad = ((N + 127) // 128) * 128        # pad output columns -> lane-dense store
    D_tot = sum(dims)
    D_aug = D_tot + 1                       # +1 ones column carries the bias
    dtype = jnp.float32

    # (B, D_tot+1): exact concatenation of per-key features + ones column.
    x_aug = jnp.concatenate(
        [x_dict[k].astype(dtype) for k in keys] + [jnp.ones((B, 1), dtype)],
        axis=1,
    )

    # Block-diagonal weight (D_tot+1, N_pad); last row holds the biases,
    # columns [N:N_pad) stay zero (ReLU(0) == 0, sliced off below -> exact).
    w_aug = jnp.zeros((D_aug, N_pad), dtype)
    row = 0
    for i, k in enumerate(keys):
        w_k, b_k = params[k]
        d_k = w_k.shape[0]
        col = i * output_dim
        w_aug = w_aug.at[row:row + d_k, col:col + output_dim].set(w_k.astype(dtype))
        w_aug = w_aug.at[D_tot, col:col + output_dim].set(b_k.astype(dtype))
        row += d_k

    # Single grid step: whole (tiny) problem lives in VMEM; one MXU pass,
    # one lane-dense output store.
    out = pl.pallas_call(
        _fused_fc_relu_kernel,
        out_shape=jax.ShapeDtypeStruct((B, N_pad), dtype),
        compiler_params=pltpu.CompilerParams(
            # ~ (B*D_aug + D_aug*N_pad + B*N_pad) * 4 B  << limit on v5e/v6e (128 MiB)
            # and v7x (64 MiB); stated explicitly so future shape growth is checked.
            vmem_limit_bytes=32 * 1024 * 1024,
        ),
    )(x_aug, w_aug)

    return out if N_pad == N else out[:, :N]


def _ref_forward(x_dict, params, output_dim):
    outs = []
    for k, (w, b) in params.items():
        if k in x_dict:
            outs.append(jnp.maximum(x_dict[k] @ w + b, 0.0))
    return jnp.concatenate(outs, axis=1)


if __name__ == "__main__":
    # Small shapes consistent with the module: per-key fc_block(v, output_dim, ReLU)
    input_dim = OrderedDict([("unit_build", 24), ("effect", 16), ("research", 12)])
    output_dim = 32
    batch = 2

    key = jax.random.PRNGKey(0)
    params = OrderedDict()
    x_dict = OrderedDict()
    for name, v in input_dim.items():
        key, kw, kb, kx = jax.random.split(key, 4)
        w = jax.random.normal(kw, (v, output_dim), dtype=jnp.float32) * 0.05
        b = jax.random.normal(kb, (output_dim,), dtype=jnp.float32) * 0.05
        params[name] = (w, b)
        x_dict[name] = jax.random.normal(kx, (batch, v), dtype=jnp.float32)

    # TODO(synk): the module also stashes per-key outputs in self.data (a Python
    # side effect); only the returned concatenated tensor is reproduced here.

    out = cumulative_stat_encoder_pallas(x_dict, params, output_dim)
    out = jax.block_until_ready(out)

    ref = _ref_forward(x_dict, params, output_dim)
    assert out.shape == (batch, len(input_dim) * output_dim), out.shape
    assert jnp.allclose(out, ref, atol=1e-5, rtol=1e-5), float(jnp.max(jnp.abs(out - ref)))

    print("KERNEL_OK")
</pallas_src>

<mosaic_0001>
module attributes {stable_mosaic.version = 11 : i64} {
  func.func @_fused_fc_relu_kernel(%arg0: memref<2x53xf32, #tpu.memory_space<vmem>>, %arg1: memref<53x128xf32, #tpu.memory_space<vmem>>, %arg2: memref<2x128xf32, #tpu.memory_space<vmem>>) attributes {dimension_semantics = [], scalar_prefetch = 0 : i64, scratch_operands = 0 : i64, tpu.core_type = #tpu.core_type<tc>} {
    %c0 = arith.constant 0 : index
    %c0_0 = arith.constant 0 : index
    %0 = vector.load %arg0[%c0, %c0_0] : memref<2x53xf32, #tpu.memory_space<vmem>>, vector<2x53xf32>
    %c0_1 = arith.constant 0 : index
    %c0_2 = arith.constant 0 : index
    %1 = vector.load %arg1[%c0_1, %c0_2] : memref<53x128xf32, #tpu.memory_space<vmem>>, vector<53x128xf32>
    %cst = arith.constant dense<0.000000e+00> : vector<2x128xf32>
    %2 = tpu.matmul %0, %1, %cst {dimension_numbers = #tpu.dot_dimension_numbers<[1], [0], [0], [1], [0, 0, 1, 1], [], []>} : vector<2x53xf32>, vector<53x128xf32>, vector<2x128xf32> -> vector<2x128xf32>
    %cst_3 = arith.constant 0.000000e+00 : f32
    %3 = vector.broadcast %cst_3 : f32 to vector<2x128xf32>
    %4 = arith.maximumf %2, %3 : vector<2x128xf32>
    %c0_4 = arith.constant 0 : index
    %c0_5 = arith.constant 0 : index
    %5 = vector.load %arg2[%c0_4, %c0_5] : memref<2x128xf32, #tpu.memory_space<vmem>>, vector<2x128xf32>
    tpu.vector_store %arg2[%c0_4, %c0_5], %4 {strides = array<i32>} : memref<2x128xf32, #tpu.memory_space<vmem>>, vector<2x128xf32>,
    return
  }
}

</mosaic_0001>

<llo_original>
// kernel: tpu_custom_call.1
$region0: #{tpu_custom_call.1}
  #allocation0 [shape = 'u32[]', space=smem, size = 0x4, offset = 0x4, fixed_abs, tag = 'smem constant byte address 0x4 - core index']
  #allocation1 [shape = 'u32[144,128]{1,0:T(1,128)}', space=vmem, size = 0x12000, scoped, tag = 'internal scratch']
  %s0 = inlined_call_operand.hbm [shape: f32[2,53], index: 0, kind: input, shape index: {}]
  %s1 = inlined_call_operand.hbm [shape: f32[53,128], index: 1, kind: input, shape index: {}]
  %s2 = inlined_call_operand.hbm [shape: f32[2,128], index: 2, kind: output, shape index: {}]
  %s3 = sld [smem:[#allocation0]]
  $region26: #{tpu_custom_call.1} parent=0
    _
  %s5 = ssub.s32 1, %s3
  %s6 = scalar_select 0, %s5, %s3
  $region1: #{tpu_custom_call.1} parent=0
    #allocation2 [shape = 'u8[1024]{0}', space=vmem, size = 0x400, scoped, tag = 'input window, operand 0, single buffered']
    #allocation3 [shape = 's32[1]{0}', space=sflag, size = 0x4, scoped, tag = 'scoped memory for tpu_custom_call.1']
    #allocation4 [shape = 's32[1]{0}', space=sflag, size = 0x4, scoped, tag = 'scoped memory for tpu_custom_call.1']
    #allocation5 [shape = 'u8[28672]{0}', space=vmem, size = 0x7000, scoped, tag = 'input window, operand 1, single buffered']
    #allocation6 [shape = 's32[1]{0}', space=sflag, size = 0x4, scoped, tag = 'scoped memory for tpu_custom_call.1']
    #allocation7 [shape = 'u8[1024]{0}', space=vmem, size = 0x400, scoped, tag = 'output window, operand 0, single buffered']
    %7 = vsyncpa [#allocation3], 0
    %8 = vsyncpa [#allocation6], 0
    %9 = vsyncpa [#allocation4], 0
    // Predicated region
    $region2: #{tpu_custom_call.1} parent=1 // pred_check
      _
    $region3: #{tpu_custom_call.1} parent=1 // pred_check_branch
      %11 = sbr.rel (0) target = $region5
    $region4: #{tpu_custom_call.1} parent=1 // pred_region
      %s13 = ssub.s32 32, 32
      %14 = vsyncadd [#allocation3], %s13
      %s16 = sshll.u32 [#allocation2], 4
      %s17 = int_to_ptr.vmem [resolvable:$true] %s16
      %19 = dma.hbm_to_vmem [thread:$0]  %s0, 32, %s17, [#allocation3]
    $region5: #{tpu_custom_call.1} parent=1 // pred_fallthru
      _
    // Predicated region
    $region6: #{tpu_custom_call.1} parent=1 // pred_check
      _
    $region7: #{tpu_custom_call.1} parent=1 // pred_check_branch
      %21 = sbr.rel (0) target = $region9
    $region8: #{tpu_custom_call.1} parent=1 // pred_region
      %s23 = ssub.s32 896, 896
      %24 = vsyncadd [#allocation6], %s23
      %s25 = sshll.u32 [#allocation5], 4
      %s26 = int_to_ptr.vmem [resolvable:$true] %s25
      %31 = dma.hbm_to_vmem [thread:$0]  %s1, 896, %s26, [#allocation6], 128, 128, 8
    $region9: #{tpu_custom_call.1} parent=1 // pred_fallthru
      _
    // Predicated region
    $region10: #{tpu_custom_call.1} parent=1 // pred_check
      _
    $region11: #{tpu_custom_call.1} parent=1 // pred_check_branch
      %33 = sbr.rel (0) target = $region13
    $region12: #{tpu_custom_call.1} parent=1 // pred_region
      %34 = dma.done [#allocation3], 32
    $region13: #{tpu_custom_call.1} parent=1 // pred_fallthru
      _
    // Predicated region
    $region14: #{tpu_custom_call.1} parent=1 // pred_check
      _
    $region15: #{tpu_custom_call.1} parent=1 // pred_check_branch
      %36 = sbr.rel (0) target = $region17
    $region16: #{tpu_custom_call.1} parent=1 // pred_region
      %37 = dma.done [#allocation6], 896
    $region17: #{tpu_custom_call.1} parent=1 // pred_fallthru
      _
    %v38 = vld [vmem:[#allocation2] sm:$0x3]
    %v39 = vld [vmem:[#allocation5] sm:$0xff]
    %v40 = vld [vmem:[#allocation5 + $0x8] sm:$0xff]
    %v41 = vld [vmem:[#allocation5 + $0x10] sm:$0xff]
    %v42 = vld [vmem:[#allocation5 + $0x18] sm:$0xff]
    %v43 = vld [vmem:[#allocation5 + $0x20] sm:$0xff]
    %v44 = vld [vmem:[#allocation5 + $0x28] sm:$0xff]
    %v45 = vld [vmem:[#allocation5 + $0x30] sm:$0x1f]
    %vm46 = vcmask 433152
    %v48 = vsel %vm46, %v38, 0
    %vm50 = vcmask 1044480
    %v52 = vsel %vm50, %v45, 0
    %54 = vmatprep.subr.mxu0 0.0
    %55 = vmatpush1.msra.mxu0 0.0
    %56 = vmatprep.subr.mxu0 0.0
    %57 = vmatpush1.msra.mxu0 0.0
    %58 = vmatprep.subr.mxu0 0.0
    %59 = vmatpush1.msra.mxu0 0.0
    %60 = vmatprep.subr.mxu0 0.0
    %61 = vmatpush1.msra.mxu0 0.0
    %62 = vmatprep.subr.mxu0 0.0
    %63 = vmatpush1.msra.mxu0 0.0
    %64 = vmatprep.subr.mxu0 0.0
    %65 = vmatpush1.msra.mxu0 0.0
    %66 = vmatprep.subr.mxu0 0.0
    %67 = vmatpush1.msra.mxu0 0.0
    %68 = vmatprep.subr.mxu0 0.0
    %69 = vmatpush1.msra.mxu0 0.0
    %70 = vmatprep.subr.mxu0 0.0
    %71 = vmatpush1.msra.mxu0 0.0
    %72 = vmatprep.subr.mxu0 0.0
    %73 = vmatpush1.msra.mxu0 %v52
    %74 = vmatprep.subr.mxu0 0.0
    %75 = vmatpush1.msra.mxu0 %v44
    %76 = vmatprep.subr.mxu0 0.0
    %77 = vmatpush1.msra.mxu0 %v43
    %78 = vmatprep.subr.mxu0 0.0
    %79 = vmatpush1.msra.mxu0 %v42
    %80 = vmatprep.subr.mxu0 0.0
    %81 = vmatpush1.msra.mxu0 %v41
    %82 = vmatprep.subr.mxu0 0.0
    %83 = vmatpush1.msra.mxu0 %v40
    %84 = vmatprep.subr.mxu0 0.0
    %85 = vmatpush1.msra.mxu0 %v39
    %86 = vmatprep.subr.mxu0 0.0
    %87 = vmatpush2.msra.mxu0 0.0
    %88 = vmatprep.subr.mxu0 0.0
    %89 = vmatpush2.msra.mxu0 0.0
    %90 = vmatprep.subr.mxu0 0.0
    %91 = vmatpush2.msra.mxu0 0.0
    %92 = vmatprep.subr.mxu0 0.0
    %93 = vmatpush2.msra.mxu0 0.0
    %94 = vmatprep.subr.mxu0 0.0
    %95 = vmatpush2.msra.mxu0 0.0
    %96 = vmatprep.subr.mxu0 0.0
    %97 = vmatpush2.msra.mxu0 0.0
    %98 = vmatprep.subr.mxu0 0.0
    %99 = vmatpush2.msra.mxu0 0.0
    %100 = vmatprep.subr.mxu0 0.0
    %101 = vmatpush2.msra.mxu0 0.0
    %102 = vmatprep.subr.mxu0 0.0
    %103 = vmatpush2.msra.mxu0 0.0
    %104 = vmatprep.subr.mxu0 0.0
    %105 = vmatpush2.msra.mxu0 0.0
    %106 = vmatprep.subr.mxu0 0.0
    %107 = vmatpush2.msra.mxu0 0.0
    %108 = vmatprep.subr.mxu0 0.0
    %109 = vmatpush2.msra.mxu0 0.0
    %110 = vmatprep.subr.mxu0 0.0
    %111 = vmatpush2.msra.mxu0 0.0
    %112 = vmatprep.subr.mxu0 0.0
    %113 = vmatpush2.msra.mxu0 0.0
    %114 = vmatprep.subr.mxu0 0.0
    %115 = vmatpush2.msra.mxu0 0.0
    %116 = vmatprep.subr.mxu0 0.0
    %117 = vmatpush2.msra.mxu0 0.0
    %118 = vmatprep.mubr.f32.mxu0 0.0
    %119 = vmatmul.mubr.f32.gmra.mxu0 %v48
    %v120 = vpop.f32.mrf.mxu0
    %v121 = vadd.f32 0.0, %v120
    %v122 = vpop.f32.mrf.mxu0
    %123 = vdwg.mxu0
    %v124 = vmax.f32 %v121, 0.0
    %125 = vst [vmem:[#allocation7] sm:$0x3] %v124
    // Predicated region
    $region18: #{tpu_custom_call.1} parent=1 // pred_check
      _
    $region19: #{tpu_custom_call.1} parent=1 // pred_check_branch
      %127 = sbr.rel (0) target = $region21
    $region20: #{tpu_custom_call.1} parent=1 // pred_region
      %s129 = ssub.s32 32, 32
      %130 = vsyncadd [#allocation4], %s129
      %s132 = sshll.u32 [#allocation7], 4
      %s133 = int_to_ptr.vmem [resolvable:$true] %s132
      %135 = dma.vmem_to_hbm [thread:$0]  %s133, 32, %s2, [#allocation4]
    $region21: #{tpu_custom_call.1} parent=1 // pred_fallthru
      _
    // Predicated region
    $region22: #{tpu_custom_call.1} parent=1 // pred_check
      _
    $region23: #{tpu_custom_call.1} parent=1 // pred_check_branch
      %137 = sbr.rel (0) target = $region25
    $region24: #{tpu_custom_call.1} parent=1 // pred_region
      %138 = dma.done [#allocation4], 32
    $region25: #{tpu_custom_call.1} parent=1 // pred_fallthru
      _
    %139 = vsyncpa [#allocation3], 1
    %140 = vsyncpa [#allocation6], 1
    %141 = vsyncpa [#allocation4], 1

</llo_original>
